<compile_context>
chip_gen: v5e
topology: v5e:2x2
jax: 0.10.0
libtpu: 0.0.40
codegen_flags: <defaults>
</compile_context>

<pallas_src>
import numpy as np
import jax
import jax.numpy as jnp
from jax.experimental import pallas as pl
from jax.experimental.pallas import tpu as pltpu


def _round_up(x, m):
    return ((x + m - 1) // m) * m


# --- shared sin/cos: one range reduction, two polynomials ---------------------
_TWO_OVER_PI = 0.6366197723675814
# Cody-Waite split of pi/2 (2x the Cephes DP1/DP2/DP3 constants; exact in f32).
_PIO2_HI = 1.5703125
_PIO2_MED = 4.837512969970703125e-4
_PIO2_LO = 7.54978995489188216e-8


def _sincos(x):
    """sin(x), cos(x) for f32 x using a single shared range reduction."""
    n = jnp.floor(x * _TWO_OVER_PI + 0.5)            # nearest multiple of pi/2
    r = x - n * _PIO2_HI
    r = r - n * _PIO2_MED
    r = r - n * _PIO2_LO                              # r in [-pi/4, pi/4]
    r2 = r * r
    # Cephes sinf/cosf minimax polynomials on [-pi/4, pi/4].
    sp = ((-1.9515295891e-4 * r2 + 8.3321608736e-3) * r2
          - 1.6666654611e-1) * r2 * r + r
    cp = ((2.443315711809948e-5 * r2 - 1.388731625493765e-3) * r2
          + 4.166664568298827e-2) * r2 * r2 - 0.5 * r2 + 1.0
    k = jnp.bitwise_and(n.astype(jnp.int32), 3)       # quadrant (works for n<0)
    swap = jnp.bitwise_and(k, 1) == 1
    s_base = jnp.where(swap, cp, sp)
    c_base = jnp.where(swap, sp, cp)
    sin_x = jnp.where(k >= 2, -s_base, s_base)                          # k in {2,3}
    cos_x = jnp.where(jnp.bitwise_and(k + 1, 2) == 2, -c_base, c_base)  # k in {1,2}
    return sin_x, cos_x


def _make_kernel(num_bins, fast_sincos):
    def kernel(x_ref, b_ref, o_ref):
        # x_ref: (tm, 5)   b_ref: (5, nb)   o_ref: (tm, 2*nb)
        x_proj = jnp.dot(x_ref[...], b_ref[...], preferred_element_type=jnp.float32)
        if fast_sincos:
            s, c = _sincos(x_proj)
        else:
            s, c = jnp.sin(x_proj), jnp.cos(x_proj)
        if num_bins % 128 == 0:
            # Two lane-dense half stores; no concatenated VMEM temp.
            o_ref[:, :num_bins] = s.astype(o_ref.dtype)
            o_ref[:, num_bins:] = c.astype(o_ref.dtype)
        else:
            # Halves not 128-lane aligned: build the full-width tile once and
            # issue a single store of the true output width.
            o_ref[...] = jnp.concatenate([s, c], axis=-1).astype(o_ref.dtype)
    return kernel


# --- tiling helpers ------------------------------------------------------------
def _tpu_vmem_and_cores():
    vmem_cap = 64 << 20          # conservative default (v7x per-core VMEM)
    cores = 1
    try:
        info = pltpu.get_tpu_info()
        vmem_cap = int(getattr(info, "vmem_capacity_bytes", vmem_cap))
        for name in ("num_tensorcores", "tensorcore_count", "num_cores"):
            v = getattr(info, name, None)
            if isinstance(v, int) and v > 0:
                cores = v
                break
    except Exception:
        pass
    if vmem_cap < (32 << 20):    # bogus / unexpected -> fall back to safe default
        vmem_cap = 64 << 20
    return vmem_cap, cores


def _vmem_bytes_per_step(tm, num_bins, out_bytes):
    lanes_x = 128                                  # 5 features pad to one lane group
    lanes_nb = _round_up(num_bins, 128)
    lanes_out = _round_up(2 * num_bins, 128)
    x_tile = tm * lanes_x * 4
    o_tile = tm * lanes_out * out_bytes
    tmp = 8 * tm * lanes_nb * 4                    # x_proj + sincos intermediates
    b_res = 8 * lanes_nb * 4
    return 2 * x_tile + 2 * o_tile + tmp + b_res


def fourier_feature_map(x, B, *, tm=None, out_dtype=jnp.float32,
                        num_cores=None, fast_sincos=True):
    """x: (..., 5) f32, B: (5, num_bins) f32 -> (..., 2*num_bins) out_dtype."""
    x = jnp.asarray(x, jnp.float32)
    B = jnp.asarray(B, jnp.float32)
    *batch, F = x.shape
    F_b, num_bins = B.shape
    assert F == F_b, "feature dims of x and B must match"

    x2 = x.reshape(-1, F)
    N = x2.shape[0]
    out_bytes = jnp.dtype(out_dtype).itemsize

    vmem_cap, detected_cores = _tpu_vmem_and_cores()
    if num_cores is None:
        num_cores = detected_cores
    # ~96 MiB usable on v5e/v6e (128 MiB physical), ~48 MiB on v7x (64 MiB).
    vmem_budget = min(3 * vmem_cap // 4, vmem_cap - (16 << 20))
    vmem_limit = min(vmem_cap - (8 << 20), vmem_budget + (8 << 20))

    # Row tile: biggest multiple of 8 that fits the budget (narrow outputs get
    # tm up to 8192 to amortize per-grid-step overhead), never larger than N.
    tm_max = 8192 if tm is None else int(tm)
    tm_eff = max(8, min(_round_up(tm_max, 8), _round_up(N, 8)))
    tm_eff = (tm_eff // 8) * 8
    while tm_eff > 8 and _vmem_bytes_per_step(tm_eff, num_bins, out_bytes) > vmem_budget:
        tm_eff = max(8, ((tm_eff // 2) // 8) * 8)

    # Megacore: keep the step count a multiple of the core count so the
    # "parallel" axis shards evenly.  Single-core chips keep one big tile.
    if num_cores > 1:
        steps = pl.cdiv(N, tm_eff)
        if steps % num_cores != 0 and steps < 8 * num_cores and N >= 8 * num_cores:
            target = _round_up(max(steps, num_cores), num_cores)
            tm_eff = max(8, _round_up(pl.cdiv(N, target), 8))

    grid = (pl.cdiv(N, tm_eff),)   # ragged last block clipped by Pallas

    out = pl.pallas_call(
        _make_kernel(num_bins, fast_sincos),
        out_shape=jax.ShapeDtypeStruct((N, 2 * num_bins), out_dtype),
        grid_spec=pltpu.PrefetchScalarGridSpec(
            num_scalar_prefetch=0,
            grid=grid,
            in_specs=[
                pl.BlockSpec((tm_eff, F), lambda i: (i, 0)),     # row tile of x
                pl.BlockSpec((F, num_bins), lambda i: (0, 0)),   # B stays resident
            ],
            out_specs=pl.BlockSpec((tm_eff, 2 * num_bins), lambda i: (i, 0)),
        ),
        compiler_params=pltpu.CompilerParams(
            dimension_semantics=("parallel",),
            vmem_limit_bytes=int(vmem_limit),
        ),
    )(x2, B)

    return out.reshape(*batch, 2 * num_bins)


# --- module parameter + reference ----------------------------------------------
def make_B(key, num_bins, b_scales=(0.0015, 0.003, 0.15, 1 / 80, 1)):
    # Deterministic stand-in for torch.randn(5, num_bins) * 2*pi * scales[:, None]
    scales = jnp.asarray(b_scales, dtype=jnp.float32)[:, None]   # (5, 1)
    g = jax.random.normal(key, (5, num_bins), dtype=jnp.float32)
    return g * (2.0 * np.pi) * scales


def _reference(x, B):
    x_proj = x @ B
    return jnp.concatenate([jnp.sin(x_proj), jnp.cos(x_proj)], axis=-1)


if __name__ == "__main__":
    key = jax.random.PRNGKey(0)
    k_b1, k_b2, k_b3, k_x = jax.random.split(key, 4)

    x = jax.random.normal(k_x, (200, 5), dtype=jnp.float32)

    # Case 1: 2*num_bins = 128 (lane-dense full-width store), single grid step.
    B1 = make_B(k_b1, 64)
    out1 = jax.block_until_ready(fourier_feature_map(x, B1))
    np.testing.assert_allclose(np.asarray(out1), np.asarray(_reference(x, B1)),
                               rtol=1e-5, atol=1e-5)
    assert out1.shape == (200, 128) and out1.dtype == jnp.float32

    # Case 2: num_bins % 128 == 0 -> two lane-dense half stores; tm=64 forces a
    # multi-step grid with a ragged last block (no wrapper padding/slicing).
    B2 = make_B(k_b2, 128)
    out2 = jax.block_until_ready(fourier_feature_map(x, B2, tm=64))
    np.testing.assert_allclose(np.asarray(out2), np.asarray(_reference(x, B2)),
                               rtol=1e-5, atol=1e-5)
    assert out2.shape == (200, 256)

    # Case 3: non-aligned num_bins (48): no padding/repack, true output width;
    # also exercises a batched input shape.
    B3 = make_B(k_b3, 48)
    xb = x.reshape(2, 100, 5)
    out3 = jax.block_until_ready(fourier_feature_map(xb, B3))
    np.testing.assert_allclose(np.asarray(out3).reshape(200, 96),
                               np.asarray(_reference(x, B3)), rtol=1e-5, atol=1e-5)
    assert out3.shape == (2, 100, 96)

    print("KERNEL_OK")
</pallas_src>

<mosaic_0001>
module attributes {stable_mosaic.version = 11 : i64} {
  func.func @kernel(%arg0: i32, %arg1: memref<200x5xf32, #tpu.memory_space<vmem>>, %arg2: memref<5x64xf32, #tpu.memory_space<vmem>>, %arg3: memref<200x128xf32, #tpu.memory_space<vmem>>) attributes {dimension_semantics = [#tpu.dimension_semantics<parallel>], iteration_bounds = array<i64: 1>, scalar_prefetch = 0 : i64, scratch_operands = 0 : i64, tpu.core_type = #tpu.core_type<tc>, window_params = [{transform_indices = @transform_0, window_bounds = array<i64: 200, 5>}, {pipeline_mode = #tpu.pipeline_mode<synchronous>, transform_indices = @transform_1, window_bounds = array<i64: 5, 64>}, {transform_indices = @transform_2, window_bounds = array<i64: 200, 128>}]} {
    %c0 = arith.constant 0 : index
    %c0_0 = arith.constant 0 : index
    %0 = vector.load %arg1[%c0, %c0_0] : memref<200x5xf32, #tpu.memory_space<vmem>>, vector<200x5xf32>
    %c0_1 = arith.constant 0 : index
    %c0_2 = arith.constant 0 : index
    %1 = vector.load %arg2[%c0_1, %c0_2] : memref<5x64xf32, #tpu.memory_space<vmem>>, vector<5x64xf32>
    %cst = arith.constant dense<0.000000e+00> : vector<200x64xf32>
    %2 = tpu.matmul %0, %1, %cst {dimension_numbers = #tpu.dot_dimension_numbers<[1], [0], [0], [1], [0, 0, 1, 1], [], []>} : vector<200x5xf32>, vector<5x64xf32>, vector<200x64xf32> -> vector<200x64xf32>
    %cst_3 = arith.constant 0.636619746 : f32
    %3 = vector.broadcast %cst_3 : f32 to vector<200x64xf32>
    %4 = arith.mulf %2, %3 : vector<200x64xf32>
    %cst_4 = arith.constant 5.000000e-01 : f32
    %5 = vector.broadcast %cst_4 : f32 to vector<200x64xf32>
    %6 = arith.addf %4, %5 : vector<200x64xf32>
    %7 = math.floor %6 : vector<200x64xf32>
    %cst_5 = arith.constant 1.5703125 : f32
    %8 = vector.broadcast %cst_5 : f32 to vector<200x64xf32>
    %9 = arith.mulf %7, %8 : vector<200x64xf32>
    %10 = arith.subf %2, %9 : vector<200x64xf32>
    %cst_6 = arith.constant 4.83751297E-4 : f32
    %11 = vector.broadcast %cst_6 : f32 to vector<200x64xf32>
    %12 = arith.mulf %7, %11 : vector<200x64xf32>
    %13 = arith.subf %10, %12 : vector<200x64xf32>
    %cst_7 = arith.constant 7.549790e-08 : f32
    %14 = vector.broadcast %cst_7 : f32 to vector<200x64xf32>
    %15 = arith.mulf %7, %14 : vector<200x64xf32>
    %16 = arith.subf %13, %15 : vector<200x64xf32>
    %17 = arith.mulf %16, %16 : vector<200x64xf32>
    %cst_8 = arith.constant -1.95152956E-4 : f32
    %18 = vector.broadcast %cst_8 : f32 to vector<200x64xf32>
    %19 = arith.mulf %18, %17 : vector<200x64xf32>
    %cst_9 = arith.constant 0.00833216123 : f32
    %20 = vector.broadcast %cst_9 : f32 to vector<200x64xf32>
    %21 = arith.addf %19, %20 : vector<200x64xf32>
    %22 = arith.mulf %21, %17 : vector<200x64xf32>
    %cst_10 = arith.constant 0.166666552 : f32
    %23 = vector.broadcast %cst_10 : f32 to vector<200x64xf32>
    %24 = arith.subf %22, %23 : vector<200x64xf32>
    %25 = arith.mulf %24, %17 : vector<200x64xf32>
    %26 = arith.mulf %25, %16 : vector<200x64xf32>
    %27 = arith.addf %26, %16 : vector<200x64xf32>
    %cst_11 = arith.constant 2.44331568E-5 : f32
    %28 = vector.broadcast %cst_11 : f32 to vector<200x64xf32>
    %29 = arith.mulf %28, %17 : vector<200x64xf32>
    %cst_12 = arith.constant 0.00138873165 : f32
    %30 = vector.broadcast %cst_12 : f32 to vector<200x64xf32>
    %31 = arith.subf %29, %30 : vector<200x64xf32>
    %32 = arith.mulf %31, %17 : vector<200x64xf32>
    %cst_13 = arith.constant 0.0416666456 : f32
    %33 = vector.broadcast %cst_13 : f32 to vector<200x64xf32>
    %34 = arith.addf %32, %33 : vector<200x64xf32>
    %35 = arith.mulf %34, %17 : vector<200x64xf32>
    %36 = arith.mulf %35, %17 : vector<200x64xf32>
    %cst_14 = arith.constant 5.000000e-01 : f32
    %37 = vector.broadcast %cst_14 : f32 to vector<200x64xf32>
    %38 = arith.mulf %37, %17 : vector<200x64xf32>
    %39 = arith.subf %36, %38 : vector<200x64xf32>
    %cst_15 = arith.constant 1.000000e+00 : f32
    %40 = vector.broadcast %cst_15 : f32 to vector<200x64xf32>
    %41 = arith.addf %39, %40 : vector<200x64xf32>
    %42 = arith.fptosi %7 : vector<200x64xf32> to vector<200x64xi32>
    %c3_i32 = arith.constant 3 : i32
    %43 = vector.broadcast %c3_i32 : i32 to vector<200x64xi32>
    %44 = arith.andi %42, %43 : vector<200x64xi32>
    %c1_i32 = arith.constant 1 : i32
    %45 = vector.broadcast %c1_i32 : i32 to vector<200x64xi32>
    %46 = arith.andi %44, %45 : vector<200x64xi32>
    %c1_i32_16 = arith.constant 1 : i32
    %47 = vector.broadcast %c1_i32_16 : i32 to vector<200x64xi32>
    %48 = arith.cmpi eq, %46, %47 : vector<200x64xi32>
    %49 = arith.select %48, %41, %27 : vector<200x64xi1>, vector<200x64xf32>
    %50 = arith.select %48, %27, %41 : vector<200x64xi1>, vector<200x64xf32>
    %c2_i32 = arith.constant 2 : i32
    %51 = vector.broadcast %c2_i32 : i32 to vector<200x64xi32>
    %52 = arith.cmpi sge, %44, %51 : vector<200x64xi32>
    %cst_17 = arith.constant 0.000000e+00 : f32
    %53 = vector.broadcast %cst_17 : f32 to vector<200x64xf32>
    %54 = arith.subf %53, %49 : vector<200x64xf32>
    %55 = arith.select %52, %54, %49 : vector<200x64xi1>, vector<200x64xf32>
    %c1_i32_18 = arith.constant 1 : i32
    %56 = vector.broadcast %c1_i32_18 : i32 to vector<200x64xi32>
    %57 = arith.addi %44, %56 : vector<200x64xi32>
    %c2_i32_19 = arith.constant 2 : i32
    %58 = vector.broadcast %c2_i32_19 : i32 to vector<200x64xi32>
    %59 = arith.andi %57, %58 : vector<200x64xi32>
    %c2_i32_20 = arith.constant 2 : i32
    %60 = vector.broadcast %c2_i32_20 : i32 to vector<200x64xi32>
    %61 = arith.cmpi eq, %59, %60 : vector<200x64xi32>
    %cst_21 = arith.constant 0.000000e+00 : f32
    %62 = vector.broadcast %cst_21 : f32 to vector<200x64xf32>
    %63 = arith.subf %62, %50 : vector<200x64xf32>
    %64 = arith.select %61, %63, %50 : vector<200x64xi1>, vector<200x64xf32>
    %65 = tpu.concatenate %55, %64 in 1 : vector<200x64xf32>, vector<200x64xf32> -> vector<200x128xf32>
    %c0_22 = arith.constant 0 : index
    %c0_23 = arith.constant 0 : index
    %66 = vector.load %arg3[%c0_22, %c0_23] : memref<200x128xf32, #tpu.memory_space<vmem>>, vector<200x128xf32>
    tpu.vector_store %arg3[%c0_22, %c0_23], %65 {strides = array<i32>} : memref<200x128xf32, #tpu.memory_space<vmem>>, vector<200x128xf32>,
    return
  }
  func.func @transform_0(%arg0: i32) -> (i32, i32) {
    %c0_i32 = arith.constant 0 : i32
    %c0_i32_0 = arith.constant 0 : i32
    return %arg0, %c0_i32 : i32, i32
  }
  func.func @transform_1(%arg0: i32) -> (i32, i32) {
    %c0_i32 = arith.constant 0 : i32
    %c0_i32_0 = arith.constant 0 : i32
    %c0_i32_1 = arith.constant 0 : i32
    return %c0_i32, %c0_i32_0 : i32, i32
  }
  func.func @transform_2(%arg0: i32) -> (i32, i32) {
    %c0_i32 = arith.constant 0 : i32
    %c0_i32_0 = arith.constant 0 : i32
    return %arg0, %c0_i32 : i32, i32
  }
}

</mosaic_0001>

<llo_original>
// kernel: tpu_custom_call.1
$region0: #{tpu_custom_call.1}
  #allocation0 [shape = 'u32[]', space=smem, size = 0x4, offset = 0x4, fixed_abs, tag = 'smem constant byte address 0x4 - core index']
  #allocation1 [shape = 'u32[72,128]{1,0:T(1,128)}', space=vmem, size = 0x9000, scoped, tag = 'internal scratch']
  %s0 = inlined_call_operand.vmem [shape: f32[200,5], index: 0, kind: input, shape index: {}]
  %s1 = inlined_call_operand.vmem [shape: f32[5,64], index: 1, kind: input, shape index: {}]
  %s2 = inlined_call_operand.hbm [shape: f32[200,128], index: 2, kind: output, shape index: {}]
  %s3 = sld [smem:[#allocation0]]
  $region18: #{tpu_custom_call.1} parent=0
    _
  %s5 = ssub.s32 1, %s3
  %s6 = scalar_select 0, %s5, %s3
  $region1: #{tpu_custom_call.1} parent=0
    #allocation2 [shape = 'u8[102400]{0}', space=vmem, size = 0x19000, scoped, tag = 'output window, operand 0, single buffered']
    #allocation3 [shape = 's32[1]{0}', space=sflag, size = 0x4, scoped, tag = 'scoped memory for tpu_custom_call.1']
    %7 = vsyncpa [#allocation3], 0
    // Predicated region
    $region2: #{tpu_custom_call.1} parent=1 // pred_check
      _
    $region3: #{tpu_custom_call.1} parent=1 // pred_check_branch
      %9 = sbr.rel (0) target = $region5
    $region4: #{tpu_custom_call.1} parent=1 // pred_region
      _
    $region5: #{tpu_custom_call.1} parent=1 // pred_fallthru
      _
    // Predicated region
    $region6: #{tpu_custom_call.1} parent=1 // pred_check
      _
    $region7: #{tpu_custom_call.1} parent=1 // pred_check_branch
      %11 = sbr.rel (0) target = $region9
    $region8: #{tpu_custom_call.1} parent=1 // pred_region
      _
    $region9: #{tpu_custom_call.1} parent=1 // pred_fallthru
      _
    %v12 = vld [vmem:[%s0] sm:$0xff]
    %v13 = vld [vmem:[%s0 + $0x8] sm:$0xff]
    %v14 = vld [vmem:[%s0 + $0x10] sm:$0xff]
    %v15 = vld [vmem:[%s0 + $0x18] sm:$0xff]
    %v16 = vld [vmem:[%s0 + $0x20] sm:$0xff]
    %v17 = vld [vmem:[%s0 + $0x28] sm:$0xff]
    %v18 = vld [vmem:[%s0 + $0x30] sm:$0xff]
    %v19 = vld [vmem:[%s0 + $0x38] sm:$0xff]
    %v20 = vld [vmem:[%s0 + $0x40] sm:$0xff]
    %v21 = vld [vmem:[%s0 + $0x48] sm:$0xff]
    %v22 = vld [vmem:[%s0 + $0x50] sm:$0xff]
    %v23 = vld [vmem:[%s0 + $0x58] sm:$0xff]
    %v24 = vld [vmem:[%s0 + $0x60] sm:$0xff]
    %v25 = vld [vmem:[%s0 + $0x68] sm:$0xff]
    %v26 = vld [vmem:[%s0 + $0x70] sm:$0xff]
    %v27 = vld [vmem:[%s0 + $0x78] sm:$0xff]
    %v28 = vld [vmem:[%s0 + $0x80] sm:$0xff]
    %v29 = vld [vmem:[%s0 + $0x88] sm:$0xff]
    %v30 = vld [vmem:[%s0 + $0x90] sm:$0xff]
    %v31 = vld [vmem:[%s0 + $0x98] sm:$0xff]
    %v32 = vld [vmem:[%s0 + $0xa0] sm:$0xff]
    %v33 = vld [vmem:[%s0 + $0xa8] sm:$0xff]
    %v34 = vld [vmem:[%s0 + $0xb0] sm:$0xff]
    %v35 = vld [vmem:[%s0 + $0xb8] sm:$0xff]
    %v36 = vld [vmem:[%s0 + $0xc0] sm:$0xff]
    %v37 = vld [vmem:[%s1] sm:$0x1f]
    %vm38 = vcmask 39936
    %v40 = vsel %vm38, %v12, 0
    %v43 = vsel %vm38, %v13, 0
    %v46 = vsel %vm38, %v14, 0
    %v49 = vsel %vm38, %v15, 0
    %v52 = vsel %vm38, %v16, 0
    %v55 = vsel %vm38, %v17, 0
    %v58 = vsel %vm38, %v18, 0
    %v61 = vsel %vm38, %v19, 0
    %v64 = vsel %vm38, %v20, 0
    %v67 = vsel %vm38, %v21, 0
    %v70 = vsel %vm38, %v22, 0
    %v73 = vsel %vm38, %v23, 0
    %v76 = vsel %vm38, %v24, 0
    %v79 = vsel %vm38, %v25, 0
    %v82 = vsel %vm38, %v26, 0
    %v85 = vsel %vm38, %v27, 0
    %v88 = vsel %vm38, %v28, 0
    %v91 = vsel %vm38, %v29, 0
    %v94 = vsel %vm38, %v30, 0
    %v97 = vsel %vm38, %v31, 0
    %v100 = vsel %vm38, %v32, 0
    %v103 = vsel %vm38, %v33, 0
    %v106 = vsel %vm38, %v34, 0
    %v109 = vsel %vm38, %v35, 0
    %v112 = vsel %vm38, %v36, 0
    %vm114 = vcmask 1044480
    %v116 = vsel %vm114, %v37, 0
    %118 = vmatpush.msra.mxu0 0.0
    %119 = vmatpush.msra.mxu0 0.0
    %120 = vmatpush.msra.mxu0 0.0
    %121 = vmatpush.msra.mxu0 0.0
    %122 = vmatpush.msra.mxu0 0.0
    %123 = vmatpush.msra.mxu0 0.0
    %124 = vmatpush.msra.mxu0 0.0
    %125 = vmatpush.msra.mxu0 0.0
    %126 = vmatpush.msra.mxu0 0.0
    %127 = vmatpush.msra.mxu0 0.0
    %128 = vmatpush.msra.mxu0 0.0
    %129 = vmatpush.msra.mxu0 0.0
    %130 = vmatpush.msra.mxu0 0.0
    %131 = vmatpush.msra.mxu0 0.0
    %132 = vmatpush.msra.mxu0 0.0
    %133 = vmatpush.msra.mxu0 %v116
    %134 = vmatmul.f32.gmra.mxu0 %v40
    %v135 = vpop.f32.mrf.mxu0
    %v136 = vadd.f32 0.0, %v135
    %137 = vmatmul.f32.gmra.mxu0 %v43
    %v138 = vpop.f32.mrf.mxu0
    %v139 = vadd.f32 0.0, %v138
    %140 = vmatmul.f32.gmra.mxu0 %v46
    %v141 = vpop.f32.mrf.mxu0
    %v142 = vadd.f32 0.0, %v141
    %143 = vmatmul.f32.gmra.mxu0 %v49
    %v144 = vpop.f32.mrf.mxu0
    %v145 = vadd.f32 0.0, %v144
    %146 = vmatmul.f32.gmra.mxu0 %v52
    %v147 = vpop.f32.mrf.mxu0
    %v148 = vadd.f32 0.0, %v147
    %149 = vmatmul.f32.gmra.mxu0 %v55
    %v150 = vpop.f32.mrf.mxu0
    %v151 = vadd.f32 0.0, %v150
    %152 = vmatmul.f32.gmra.mxu0 %v58
    %v153 = vpop.f32.mrf.mxu0
    %v154 = vadd.f32 0.0, %v153
    %155 = vmatmul.f32.gmra.mxu0 %v61
    %v156 = vpop.f32.mrf.mxu0
    %v157 = vadd.f32 0.0, %v156
    %158 = vmatmul.f32.gmra.mxu0 %v64
    %v159 = vpop.f32.mrf.mxu0
    %v160 = vadd.f32 0.0, %v159
    %161 = vmatmul.f32.gmra.mxu0 %v67
    %v162 = vpop.f32.mrf.mxu0
    %v163 = vadd.f32 0.0, %v162
    %164 = vmatmul.f32.gmra.mxu0 %v70
    %v165 = vpop.f32.mrf.mxu0
    %v166 = vadd.f32 0.0, %v165
    %167 = vmatmul.f32.gmra.mxu0 %v73
    %v168 = vpop.f32.mrf.mxu0
    %v169 = vadd.f32 0.0, %v168
    %170 = vmatmul.f32.gmra.mxu0 %v76
    %v171 = vpop.f32.mrf.mxu0
    %v172 = vadd.f32 0.0, %v171
    %173 = vmatmul.f32.gmra.mxu0 %v79
    %v174 = vpop.f32.mrf.mxu0
    %v175 = vadd.f32 0.0, %v174
    %176 = vmatmul.f32.gmra.mxu0 %v82
    %v177 = vpop.f32.mrf.mxu0
    %v178 = vadd.f32 0.0, %v177
    %179 = vmatmul.f32.gmra.mxu0 %v85
    %v180 = vpop.f32.mrf.mxu0
    %v181 = vadd.f32 0.0, %v180
    %182 = vmatmul.f32.gmra.mxu0 %v88
    %v183 = vpop.f32.mrf.mxu0
    %v184 = vadd.f32 0.0, %v183
    %185 = vmatmul.f32.gmra.mxu0 %v91
    %v186 = vpop.f32.mrf.mxu0
    %v187 = vadd.f32 0.0, %v186
    %188 = vmatmul.f32.gmra.mxu0 %v94
    %v189 = vpop.f32.mrf.mxu0
    %v190 = vadd.f32 0.0, %v189
    %191 = vmatmul.f32.gmra.mxu0 %v97
    %v192 = vpop.f32.mrf.mxu0
    %v193 = vadd.f32 0.0, %v192
    %194 = vmatmul.f32.gmra.mxu0 %v100
    %v195 = vpop.f32.mrf.mxu0
    %v196 = vadd.f32 0.0, %v195
    %197 = vmatmul.f32.gmra.mxu0 %v103
    %v198 = vpop.f32.mrf.mxu0
    %v199 = vadd.f32 0.0, %v198
    %200 = vmatmul.f32.gmra.mxu0 %v106
    %v201 = vpop.f32.mrf.mxu0
    %v202 = vadd.f32 0.0, %v201
    %203 = vmatmul.f32.gmra.mxu0 %v109
    %v204 = vpop.f32.mrf.mxu0
    %v205 = vadd.f32 0.0, %v204
    %206 = vmatmul.f32.gmra.mxu0 %v112
    %v207 = vpop.f32.mrf.mxu0
    %v208 = vadd.f32 0.0, %v207
    %209 = vdwg.mxu0
    %v210 = vmul.f32 %v136, 0.63661975
    %v211 = vmul.f32 %v139, 0.63661975
    %v212 = vmul.f32 %v142, 0.63661975
    %v213 = vmul.f32 %v145, 0.63661975
    %v214 = vmul.f32 %v148, 0.63661975
    %v215 = vmul.f32 %v151, 0.63661975
    %v216 = vmul.f32 %v154, 0.63661975
    %v217 = vmul.f32 %v157, 0.63661975
    %v218 = vmul.f32 %v160, 0.63661975
    %v219 = vmul.f32 %v163, 0.63661975
    %v220 = vmul.f32 %v166, 0.63661975
    %v221 = vmul.f32 %v169, 0.63661975
    %v222 = vmul.f32 %v172, 0.63661975
    %v223 = vmul.f32 %v175, 0.63661975
    %v224 = vmul.f32 %v178, 0.63661975
    %v225 = vmul.f32 %v181, 0.63661975
    %v226 = vmul.f32 %v184, 0.63661975
    %v227 = vmul.f32 %v187, 0.63661975
    %v228 = vmul.f32 %v190, 0.63661975
    %v229 = vmul.f32 %v193, 0.63661975
    %v230 = vmul.f32 %v196, 0.63661975
    %v231 = vmul.f32 %v199, 0.63661975
    %v232 = vmul.f32 %v202, 0.63661975
    %v233 = vmul.f32 %v205, 0.63661975
    %v234 = vmul.f32 %v208, 0.63661975
    %v235 = vadd.f32 %v210, 0.5
    %v236 = vadd.f32 %v211, 0.5
    %v237 = vadd.f32 %v212, 0.5
    %v238 = vadd.f32 %v213, 0.5
    %v239 = vadd.f32 %v214, 0.5
    %v240 = vadd.f32 %v215, 0.5
    %v241 = vadd.f32 %v216, 0.5
    %v242 = vadd.f32 %v217, 0.5
    %v243 = vadd.f32 %v218, 0.5
    %v244 = vadd.f32 %v219, 0.5
    %v245 = vadd.f32 %v220, 0.5
    %v246 = vadd.f32 %v221, 0.5
    %v247 = vadd.f32 %v222, 0.5
    %v248 = vadd.f32 %v223, 0.5
    %v249 = vadd.f32 %v224, 0.5
    %v250 = vadd.f32 %v225, 0.5
    %v251 = vadd.f32 %v226, 0.5
    %v252 = vadd.f32 %v227, 0.5
    %v253 = vadd.f32 %v228, 0.5
    %v254 = vadd.f32 %v229, 0.5
    %v255 = vadd.f32 %v230, 0.5
    %v256 = vadd.f32 %v231, 0.5
    %v257 = vadd.f32 %v232, 0.5
    %v258 = vadd.f32 %v233, 0.5
    %v259 = vadd.f32 %v234, 0.5
    %v260 = vfloor.f32 %v235
    %v261 = vfloor.f32 %v236
    %v262 = vfloor.f32 %v237
    %v263 = vfloor.f32 %v238
    %v264 = vfloor.f32 %v239
    %v265 = vfloor.f32 %v240
    %v266 = vfloor.f32 %v241
    %v267 = vfloor.f32 %v242
    %v268 = vfloor.f32 %v243
    %v269 = vfloor.f32 %v244
    %v270 = vfloor.f32 %v245
    %v271 = vfloor.f32 %v246
    %v272 = vfloor.f32 %v247
    %v273 = vfloor.f32 %v248
    %v274 = vfloor.f32 %v249
    %v275 = vfloor.f32 %v250
    %v276 = vfloor.f32 %v251
    %v277 = vfloor.f32 %v252
    %v278 = vfloor.f32 %v253
    %v279 = vfloor.f32 %v254
    %v280 = vfloor.f32 %v255
    %v281 = vfloor.f32 %v256
    %v282 = vfloor.f32 %v257
    %v283 = vfloor.f32 %v258
    %v284 = vfloor.f32 %v259
    %v285 = vmul.f32 %v260, 1.5703125
    %v286 = vmul.f32 %v261, 1.5703125
    %v287 = vmul.f32 %v262, 1.5703125
    %v288 = vmul.f32 %v263, 1.5703125
    %v289 = vmul.f32 %v264, 1.5703125
    %v290 = vmul.f32 %v265, 1.5703125
    %v291 = vmul.f32 %v266, 1.5703125
    %v292 = vmul.f32 %v267, 1.5703125
    %v293 = vmul.f32 %v268, 1.5703125
    %v294 = vmul.f32 %v269, 1.5703125
    %v295 = vmul.f32 %v270, 1.5703125
    %v296 = vmul.f32 %v271, 1.5703125
    %v297 = vmul.f32 %v272, 1.5703125
    %v298 = vmul.f32 %v273, 1.5703125
    %v299 = vmul.f32 %v274, 1.5703125
    %v300 = vmul.f32 %v275, 1.5703125
    %v301 = vmul.f32 %v276, 1.5703125
    %v302 = vmul.f32 %v277, 1.5703125
    %v303 = vmul.f32 %v278, 1.5703125
    %v304 = vmul.f32 %v279, 1.5703125
    %v305 = vmul.f32 %v280, 1.5703125
    %v306 = vmul.f32 %v281, 1.5703125
    %v307 = vmul.f32 %v282, 1.5703125
    %v308 = vmul.f32 %v283, 1.5703125
    %v309 = vmul.f32 %v284, 1.5703125
    %v310 = vsub.f32 %v136, %v285
    %v311 = vsub.f32 %v139, %v286
    %v312 = vsub.f32 %v142, %v287
    %v313 = vsub.f32 %v145, %v288
    %v314 = vsub.f32 %v148, %v289
    %v315 = vsub.f32 %v151, %v290
    %v316 = vsub.f32 %v154, %v291
    %v317 = vsub.f32 %v157, %v292
    %v318 = vsub.f32 %v160, %v293
    %v319 = vsub.f32 %v163, %v294
    %v320 = vsub.f32 %v166, %v295
    %v321 = vsub.f32 %v169, %v296
    %v322 = vsub.f32 %v172, %v297
    %v323 = vsub.f32 %v175, %v298
    %v324 = vsub.f32 %v178, %v299
    %v325 = vsub.f32 %v181, %v300
    %v326 = vsub.f32 %v184, %v301
    %v327 = vsub.f32 %v187, %v302
    %v328 = vsub.f32 %v190, %v303
    %v329 = vsub.f32 %v193, %v304
    %v330 = vsub.f32 %v196, %v305
    %v331 = vsub.f32 %v199, %v306
    %v332 = vsub.f32 %v202, %v307
    %v333 = vsub.f32 %v205, %v308
    %v334 = vsub.f32 %v208, %v309
    %v335 = vmul.f32 %v260, 0.0004837513
    %v336 = vmul.f32 %v261, 0.0004837513
    %v337 = vmul.f32 %v262, 0.0004837513
    %v338 = vmul.f32 %v263, 0.0004837513
    %v339 = vmul.f32 %v264, 0.0004837513
    %v340 = vmul.f32 %v265, 0.0004837513
    %v341 = vmul.f32 %v266, 0.0004837513
    %v342 = vmul.f32 %v267, 0.0004837513
    %v343 = vmul.f32 %v268, 0.0004837513
    %v344 = vmul.f32 %v269, 0.0004837513
    %v345 = vmul.f32 %v270, 0.0004837513
    %v346 = vmul.f32 %v271, 0.0004837513
    %v347 = vmul.f32 %v272, 0.0004837513
    %v348 = vmul.f32 %v273, 0.0004837513
    %v349 = vmul.f32 %v274, 0.0004837513
    %v350 = vmul.f32 %v275, 0.0004837513
    %v351 = vmul.f32 %v276, 0.0004837513
    %v352 = vmul.f32 %v277, 0.0004837513
    %v353 = vmul.f32 %v278, 0.0004837513
    %v354 = vmul.f32 %v279, 0.0004837513
    %v355 = vmul.f32 %v280, 0.0004837513
    %v356 = vmul.f32 %v281, 0.0004837513
    %v357 = vmul.f32 %v282, 0.0004837513
    %v358 = vmul.f32 %v283, 0.0004837513
    %v359 = vmul.f32 %v284, 0.0004837513
    %v360 = vsub.f32 %v310, %v335
    %v361 = vsub.f32 %v311, %v336
    %v362 = vsub.f32 %v312, %v337
    %v363 = vsub.f32 %v313, %v338
    %v364 = vsub.f32 %v314, %v339
    %v365 = vsub.f32 %v315, %v340
    %v366 = vsub.f32 %v316, %v341
    %v367 = vsub.f32 %v317, %v342
    %v368 = vsub.f32 %v318, %v343
    %v369 = vsub.f32 %v319, %v344
    %v370 = vsub.f32 %v320, %v345
    %v371 = vsub.f32 %v321, %v346
    %v372 = vsub.f32 %v322, %v347
    %v373 = vsub.f32 %v323, %v348
    %v374 = vsub.f32 %v324, %v349
    %v375 = vsub.f32 %v325, %v350
    %v376 = vsub.f32 %v326, %v351
    %v377 = vsub.f32 %v327, %v352
    %v378 = vsub.f32 %v328, %v353
    %v379 = vsub.f32 %v329, %v354
    %v380 = vsub.f32 %v330, %v355
    %v381 = vsub.f32 %v331, %v356
    %v382 = vsub.f32 %v332, %v357
    %v383 = vsub.f32 %v333, %v358
    %v384 = vsub.f32 %v334, %v359
    %v385 = vmul.f32 %v260, 7.54979e-08
    %v386 = vmul.f32 %v261, 7.54979e-08
    %v387 = vmul.f32 %v262, 7.54979e-08
    %v388 = vmul.f32 %v263, 7.54979e-08
    %v389 = vmul.f32 %v264, 7.54979e-08
    %v390 = vmul.f32 %v265, 7.54979e-08
    %v391 = vmul.f32 %v266, 7.54979e-08
    %v392 = vmul.f32 %v267, 7.54979e-08
    %v393 = vmul.f32 %v268, 7.54979e-08
    %v394 = vmul.f32 %v269, 7.54979e-08
    %v395 = vmul.f32 %v270, 7.54979e-08
    %v396 = vmul.f32 %v271, 7.54979e-08
    %v397 = vmul.f32 %v272, 7.54979e-08
    %v398 = vmul.f32 %v273, 7.54979e-08
    %v399 = vmul.f32 %v274, 7.54979e-08
    %v400 = vmul.f32 %v275, 7.54979e-08
    %v401 = vmul.f32 %v276, 7.54979e-08
    %v402 = vmul.f32 %v277, 7.54979e-08
    %v403 = vmul.f32 %v278, 7.54979e-08
    %v404 = vmul.f32 %v279, 7.54979e-08
    %v405 = vmul.f32 %v280, 7.54979e-08
    %v406 = vmul.f32 %v281, 7.54979e-08
    %v407 = vmul.f32 %v282, 7.54979e-08
    %v408 = vmul.f32 %v283, 7.54979e-08
    %v409 = vmul.f32 %v284, 7.54979e-08
    %v410 = vsub.f32 %v360, %v385
    %v411 = vsub.f32 %v361, %v386
    %v412 = vsub.f32 %v362, %v387
    %v413 = vsub.f32 %v363, %v388
    %v414 = vsub.f32 %v364, %v389
    %v415 = vsub.f32 %v365, %v390
    %v416 = vsub.f32 %v366, %v391
    %v417 = vsub.f32 %v367, %v392
    %v418 = vsub.f32 %v368, %v393
    %v419 = vsub.f32 %v369, %v394
    %v420 = vsub.f32 %v370, %v395
    %v421 = vsub.f32 %v371, %v396
    %v422 = vsub.f32 %v372, %v397
    %v423 = vsub.f32 %v373, %v398
    %v424 = vsub.f32 %v374, %v399
    %v425 = vsub.f32 %v375, %v400
    %v426 = vsub.f32 %v376, %v401
    %v427 = vsub.f32 %v377, %v402
    %v428 = vsub.f32 %v378, %v403
    %v429 = vsub.f32 %v379, %v404
    %v430 = vsub.f32 %v380, %v405
    %v431 = vsub.f32 %v381, %v406
    %v432 = vsub.f32 %v382, %v407
    %v433 = vsub.f32 %v383, %v408
    %v434 = vsub.f32 %v384, %v409
    %v435 = vmul.f32 %v410, %v410
    %v436 = vmul.f32 %v411, %v411
    %v437 = vmul.f32 %v412, %v412
    %v438 = vmul.f32 %v413, %v413
    %v439 = vmul.f32 %v414, %v414
    %v440 = vmul.f32 %v415, %v415
    %v441 = vmul.f32 %v416, %v416
    %v442 = vmul.f32 %v417, %v417
    %v443 = vmul.f32 %v418, %v418
    %v444 = vmul.f32 %v419, %v419
    %v445 = vmul.f32 %v420, %v420
    %v446 = vmul.f32 %v421, %v421
    %v447 = vmul.f32 %v422, %v422
    %v448 = vmul.f32 %v423, %v423
    %v449 = vmul.f32 %v424, %v424
    %v450 = vmul.f32 %v425, %v425
    %v451 = vmul.f32 %v426, %v426
    %v452 = vmul.f32 %v427, %v427
    %v453 = vmul.f32 %v428, %v428
    %v454 = vmul.f32 %v429, %v429
    %v455 = vmul.f32 %v430, %v430
    %v456 = vmul.f32 %v431, %v431
    %v457 = vmul.f32 %v432, %v432
    %v458 = vmul.f32 %v433, %v433
    %v459 = vmul.f32 %v434, %v434
    %v460 = vmul.f32 %v435, -0.00019515296
    %v461 = vmul.f32 %v436, -0.00019515296
    %v462 = vmul.f32 %v437, -0.00019515296
    %v463 = vmul.f32 %v438, -0.00019515296
    %v464 = vmul.f32 %v439, -0.00019515296
    %v465 = vmul.f32 %v440, -0.00019515296
    %v466 = vmul.f32 %v441, -0.00019515296
    %v467 = vmul.f32 %v442, -0.00019515296
    %v468 = vmul.f32 %v443, -0.00019515296
    %v469 = vmul.f32 %v444, -0.00019515296
    %v470 = vmul.f32 %v445, -0.00019515296
    %v471 = vmul.f32 %v446, -0.00019515296
    %v472 = vmul.f32 %v447, -0.00019515296
    %v473 = vmul.f32 %v448, -0.00019515296
    %v474 = vmul.f32 %v449, -0.00019515296
    %v475 = vmul.f32 %v450, -0.00019515296
    %v476 = vmul.f32 %v451, -0.00019515296
    %v477 = vmul.f32 %v452, -0.00019515296
    %v478 = vmul.f32 %v453, -0.00019515296
    %v479 = vmul.f32 %v454, -0.00019515296
    %v480 = vmul.f32 %v455, -0.00019515296
    %v481 = vmul.f32 %v456, -0.00019515296
    %v482 = vmul.f32 %v457, -0.00019515296
    %v483 = vmul.f32 %v458, -0.00019515296
    %v484 = vmul.f32 %v459, -0.00019515296
    %v485 = vadd.f32 %v460, 0.008332161
    %v486 = vadd.f32 %v461, 0.008332161
    %v487 = vadd.f32 %v462, 0.008332161
    %v488 = vadd.f32 %v463, 0.008332161
    %v489 = vadd.f32 %v464, 0.008332161
    %v490 = vadd.f32 %v465, 0.008332161
    %v491 = vadd.f32 %v466, 0.008332161
    %v492 = vadd.f32 %v467, 0.008332161
    %v493 = vadd.f32 %v468, 0.008332161
    %v494 = vadd.f32 %v469, 0.008332161
    %v495 = vadd.f32 %v470, 0.008332161
    %v496 = vadd.f32 %v471, 0.008332161
    %v497 = vadd.f32 %v472, 0.008332161
    %v498 = vadd.f32 %v473, 0.008332161
    %v499 = vadd.f32 %v474, 0.008332161
    %v500 = vadd.f32 %v475, 0.008332161
    %v501 = vadd.f32 %v476, 0.008332161
    %v502 = vadd.f32 %v477, 0.008332161
    %v503 = vadd.f32 %v478, 0.008332161
    %v504 = vadd.f32 %v479, 0.008332161
    %v505 = vadd.f32 %v480, 0.008332161
    %v506 = vadd.f32 %v481, 0.008332161
    %v507 = vadd.f32 %v482, 0.008332161
    %v508 = vadd.f32 %v483, 0.008332161
    %v509 = vadd.f32 %v484, 0.008332161
    %v510 = vmul.f32 %v485, %v435
    %v511 = vmul.f32 %v486, %v436
    %v512 = vmul.f32 %v487, %v437
    %v513 = vmul.f32 %v488, %v438
    %v514 = vmul.f32 %v489, %v439
    %v515 = vmul.f32 %v490, %v440
    %v516 = vmul.f32 %v491, %v441
    %v517 = vmul.f32 %v492, %v442
    %v518 = vmul.f32 %v493, %v443
    %v519 = vmul.f32 %v494, %v444
    %v520 = vmul.f32 %v495, %v445
    %v521 = vmul.f32 %v496, %v446
    %v522 = vmul.f32 %v497, %v447
    %v523 = vmul.f32 %v498, %v448
    %v524 = vmul.f32 %v499, %v449
    %v525 = vmul.f32 %v500, %v450
    %v526 = vmul.f32 %v501, %v451
    %v527 = vmul.f32 %v502, %v452
    %v528 = vmul.f32 %v503, %v453
    %v529 = vmul.f32 %v504, %v454
    %v530 = vmul.f32 %v505, %v455
    %v531 = vmul.f32 %v506, %v456
    %v532 = vmul.f32 %v507, %v457
    %v533 = vmul.f32 %v508, %v458
    %v534 = vmul.f32 %v509, %v459
    %v535 = vsub.f32 %v510, 0.16666655
    %v536 = vsub.f32 %v511, 0.16666655
    %v537 = vsub.f32 %v512, 0.16666655
    %v538 = vsub.f32 %v513, 0.16666655
    %v539 = vsub.f32 %v514, 0.16666655
    %v540 = vsub.f32 %v515, 0.16666655
    %v541 = vsub.f32 %v516, 0.16666655
    %v542 = vsub.f32 %v517, 0.16666655
    %v543 = vsub.f32 %v518, 0.16666655
    %v544 = vsub.f32 %v519, 0.16666655
    %v545 = vsub.f32 %v520, 0.16666655
    %v546 = vsub.f32 %v521, 0.16666655
    %v547 = vsub.f32 %v522, 0.16666655
    %v548 = vsub.f32 %v523, 0.16666655
    %v549 = vsub.f32 %v524, 0.16666655
    %v550 = vsub.f32 %v525, 0.16666655
    %v551 = vsub.f32 %v526, 0.16666655
    %v552 = vsub.f32 %v527, 0.16666655
    %v553 = vsub.f32 %v528, 0.16666655
    %v554 = vsub.f32 %v529, 0.16666655
    %v555 = vsub.f32 %v530, 0.16666655
    %v556 = vsub.f32 %v531, 0.16666655
    %v557 = vsub.f32 %v532, 0.16666655
    %v558 = vsub.f32 %v533, 0.16666655
    %v559 = vsub.f32 %v534, 0.16666655
    %v560 = vmul.f32 %v535, %v435
    %v561 = vmul.f32 %v536, %v436
    %v562 = vmul.f32 %v537, %v437
    %v563 = vmul.f32 %v538, %v438
    %v564 = vmul.f32 %v539, %v439
    %v565 = vmul.f32 %v540, %v440
    %v566 = vmul.f32 %v541, %v441
    %v567 = vmul.f32 %v542, %v442
    %v568 = vmul.f32 %v543, %v443
    %v569 = vmul.f32 %v544, %v444
    %v570 = vmul.f32 %v545, %v445
    %v571 = vmul.f32 %v546, %v446
    %v572 = vmul.f32 %v547, %v447
    %v573 = vmul.f32 %v548, %v448
    %v574 = vmul.f32 %v549, %v449
    %v575 = vmul.f32 %v550, %v450
    %v576 = vmul.f32 %v551, %v451
    %v577 = vmul.f32 %v552, %v452
    %v578 = vmul.f32 %v553, %v453
    %v579 = vmul.f32 %v554, %v454
    %v580 = vmul.f32 %v555, %v455
    %v581 = vmul.f32 %v556, %v456
    %v582 = vmul.f32 %v557, %v457
    %v583 = vmul.f32 %v558, %v458
    %v584 = vmul.f32 %v559, %v459
    %v585 = vmul.f32 %v560, %v410
    %v586 = vmul.f32 %v561, %v411
    %v587 = vmul.f32 %v562, %v412
    %v588 = vmul.f32 %v563, %v413
    %v589 = vmul.f32 %v564, %v414
    %v590 = vmul.f32 %v565, %v415
    %v591 = vmul.f32 %v566, %v416
    %v592 = vmul.f32 %v567, %v417
    %v593 = vmul.f32 %v568, %v418
    %v594 = vmul.f32 %v569, %v419
    %v595 = vmul.f32 %v570, %v420
    %v596 = vmul.f32 %v571, %v421
    %v597 = vmul.f32 %v572, %v422
    %v598 = vmul.f32 %v573, %v423
    %v599 = vmul.f32 %v574, %v424
    %v600 = vmul.f32 %v575, %v425
    %v601 = vmul.f32 %v576, %v426
    %v602 = vmul.f32 %v577, %v427
    %v603 = vmul.f32 %v578, %v428
    %v604 = vmul.f32 %v579, %v429
    %v605 = vmul.f32 %v580, %v430
    %v606 = vmul.f32 %v581, %v431
    %v607 = vmul.f32 %v582, %v432
    %v608 = vmul.f32 %v583, %v433
    %v609 = vmul.f32 %v584, %v434
    %v610 = vadd.f32 %v585, %v410
    %v611 = vadd.f32 %v586, %v411
    %v612 = vadd.f32 %v587, %v412
    %v613 = vadd.f32 %v588, %v413
    %v614 = vadd.f32 %v589, %v414
    %v615 = vadd.f32 %v590, %v415
    %v616 = vadd.f32 %v591, %v416
    %v617 = vadd.f32 %v592, %v417
    %v618 = vadd.f32 %v593, %v418
    %v619 = vadd.f32 %v594, %v419
    %v620 = vadd.f32 %v595, %v420
    %v621 = vadd.f32 %v596, %v421
    %v622 = vadd.f32 %v597, %v422
    %v623 = vadd.f32 %v598, %v423
    %v624 = vadd.f32 %v599, %v424
    %v625 = vadd.f32 %v600, %v425
    %v626 = vadd.f32 %v601, %v426
    %v627 = vadd.f32 %v602, %v427
    %v628 = vadd.f32 %v603, %v428
    %v629 = vadd.f32 %v604, %v429
    %v630 = vadd.f32 %v605, %v430
    %v631 = vadd.f32 %v606, %v431
    %v632 = vadd.f32 %v607, %v432
    %v633 = vadd.f32 %v608, %v433
    %v634 = vadd.f32 %v609, %v434
    %v635 = vmul.f32 %v435, 2.4433157e-05
    %v636 = vmul.f32 %v436, 2.4433157e-05
    %v637 = vmul.f32 %v437, 2.4433157e-05
    %v638 = vmul.f32 %v438, 2.4433157e-05
    %v639 = vmul.f32 %v439, 2.4433157e-05
    %v640 = vmul.f32 %v440, 2.4433157e-05
    %v641 = vmul.f32 %v441, 2.4433157e-05
    %v642 = vmul.f32 %v442, 2.4433157e-05
    %v643 = vmul.f32 %v443, 2.4433157e-05
    %v644 = vmul.f32 %v444, 2.4433157e-05
    %v645 = vmul.f32 %v445, 2.4433157e-05
    %v646 = vmul.f32 %v446, 2.4433157e-05
    %v647 = vmul.f32 %v447, 2.4433157e-05
    %v648 = vmul.f32 %v448, 2.4433157e-05
    %v649 = vmul.f32 %v449, 2.4433157e-05
    %v650 = vmul.f32 %v450, 2.4433157e-05
    %v651 = vmul.f32 %v451, 2.4433157e-05
    %v652 = vmul.f32 %v452, 2.4433157e-05
    %v653 = vmul.f32 %v453, 2.4433157e-05
    %v654 = vmul.f32 %v454, 2.4433157e-05
    %v655 = vmul.f32 %v455, 2.4433157e-05
    %v656 = vmul.f32 %v456, 2.4433157e-05
    %v657 = vmul.f32 %v457, 2.4433157e-05
    %v658 = vmul.f32 %v458, 2.4433157e-05
    %v659 = vmul.f32 %v459, 2.4433157e-05
    %v660 = vsub.f32 %v635, 0.0013887316
    %v661 = vsub.f32 %v636, 0.0013887316
    %v662 = vsub.f32 %v637, 0.0013887316
    %v663 = vsub.f32 %v638, 0.0013887316
    %v664 = vsub.f32 %v639, 0.0013887316
    %v665 = vsub.f32 %v640, 0.0013887316
    %v666 = vsub.f32 %v641, 0.0013887316
    %v667 = vsub.f32 %v642, 0.0013887316
    %v668 = vsub.f32 %v643, 0.0013887316
    %v669 = vsub.f32 %v644, 0.0013887316
    %v670 = vsub.f32 %v645, 0.0013887316
    %v671 = vsub.f32 %v646, 0.0013887316
    %v672 = vsub.f32 %v647, 0.0013887316
    %v673 = vsub.f32 %v648, 0.0013887316
    %v674 = vsub.f32 %v649, 0.0013887316
    %v675 = vsub.f32 %v650, 0.0013887316
    %v676 = vsub.f32 %v651, 0.0013887316
    %v677 = vsub.f32 %v652, 0.0013887316
    %v678 = vsub.f32 %v653, 0.0013887316
    %v679 = vsub.f32 %v654, 0.0013887316
    %v680 = vsub.f32 %v655, 0.0013887316
    %v681 = vsub.f32 %v656, 0.0013887316
    %v682 = vsub.f32 %v657, 0.0013887316
    %v683 = vsub.f32 %v658, 0.0013887316
    %v684 = vsub.f32 %v659, 0.0013887316
    %v685 = vmul.f32 %v660, %v435
    %v686 = vmul.f32 %v661, %v436
    %v687 = vmul.f32 %v662, %v437
    %v688 = vmul.f32 %v663, %v438
    %v689 = vmul.f32 %v664, %v439
    %v690 = vmul.f32 %v665, %v440
    %v691 = vmul.f32 %v666, %v441
    %v692 = vmul.f32 %v667, %v442
    %v693 = vmul.f32 %v668, %v443
    %v694 = vmul.f32 %v669, %v444
    %v695 = vmul.f32 %v670, %v445
    %v696 = vmul.f32 %v671, %v446
    %v697 = vmul.f32 %v672, %v447
    %v698 = vmul.f32 %v673, %v448
    %v699 = vmul.f32 %v674, %v449
    %v700 = vmul.f32 %v675, %v450
    %v701 = vmul.f32 %v676, %v451
    %v702 = vmul.f32 %v677, %v452
    %v703 = vmul.f32 %v678, %v453
    %v704 = vmul.f32 %v679, %v454
    %v705 = vmul.f32 %v680, %v455
    %v706 = vmul.f32 %v681, %v456
    %v707 = vmul.f32 %v682, %v457
    %v708 = vmul.f32 %v683, %v458
    %v709 = vmul.f32 %v684, %v459
    %v710 = vadd.f32 %v685, 0.041666646
    %v711 = vadd.f32 %v686, 0.041666646
    %v712 = vadd.f32 %v687, 0.041666646
    %v713 = vadd.f32 %v688, 0.041666646
    %v714 = vadd.f32 %v689, 0.041666646
    %v715 = vadd.f32 %v690, 0.041666646
    %v716 = vadd.f32 %v691, 0.041666646
    %v717 = vadd.f32 %v692, 0.041666646
    %v718 = vadd.f32 %v693, 0.041666646
    %v719 = vadd.f32 %v694, 0.041666646
    %v720 = vadd.f32 %v695, 0.041666646
    %v721 = vadd.f32 %v696, 0.041666646
    %v722 = vadd.f32 %v697, 0.041666646
    %v723 = vadd.f32 %v698, 0.041666646
    %v724 = vadd.f32 %v699, 0.041666646
    %v725 = vadd.f32 %v700, 0.041666646
    %v726 = vadd.f32 %v701, 0.041666646
    %v727 = vadd.f32 %v702, 0.041666646
    %v728 = vadd.f32 %v703, 0.041666646
    %v729 = vadd.f32 %v704, 0.041666646
    %v730 = vadd.f32 %v705, 0.041666646
    %v731 = vadd.f32 %v706, 0.041666646
    %v732 = vadd.f32 %v707, 0.041666646
    %v733 = vadd.f32 %v708, 0.041666646
    %v734 = vadd.f32 %v709, 0.041666646
    %v735 = vmul.f32 %v710, %v435
    %v736 = vmul.f32 %v711, %v436
    %v737 = vmul.f32 %v712, %v437
    %v738 = vmul.f32 %v713, %v438
    %v739 = vmul.f32 %v714, %v439
    %v740 = vmul.f32 %v715, %v440
    %v741 = vmul.f32 %v716, %v441
    %v742 = vmul.f32 %v717, %v442
    %v743 = vmul.f32 %v718, %v443
    %v744 = vmul.f32 %v719, %v444
    %v745 = vmul.f32 %v720, %v445
    %v746 = vmul.f32 %v721, %v446
    %v747 = vmul.f32 %v722, %v447
    %v748 = vmul.f32 %v723, %v448
    %v749 = vmul.f32 %v724, %v449
    %v750 = vmul.f32 %v725, %v450
    %v751 = vmul.f32 %v726, %v451
    %v752 = vmul.f32 %v727, %v452
    %v753 = vmul.f32 %v728, %v453
    %v754 = vmul.f32 %v729, %v454
    %v755 = vmul.f32 %v730, %v455
    %v756 = vmul.f32 %v731, %v456
    %v757 = vmul.f32 %v732, %v457
    %v758 = vmul.f32 %v733, %v458
    %v759 = vmul.f32 %v734, %v459
    %v760 = vmul.f32 %v735, %v435
    %v761 = vmul.f32 %v736, %v436
    %v762 = vmul.f32 %v737, %v437
    %v763 = vmul.f32 %v738, %v438
    %v764 = vmul.f32 %v739, %v439
    %v765 = vmul.f32 %v740, %v440
    %v766 = vmul.f32 %v741, %v441
    %v767 = vmul.f32 %v742, %v442
    %v768 = vmul.f32 %v743, %v443
    %v769 = vmul.f32 %v744, %v444
    %v770 = vmul.f32 %v745, %v445
    %v771 = vmul.f32 %v746, %v446
    %v772 = vmul.f32 %v747, %v447
    %v773 = vmul.f32 %v748, %v448
    %v774 = vmul.f32 %v749, %v449
    %v775 = vmul.f32 %v750, %v450
    %v776 = vmul.f32 %v751, %v451
    %v777 = vmul.f32 %v752, %v452
    %v778 = vmul.f32 %v753, %v453
    %v779 = vmul.f32 %v754, %v454
    %v780 = vmul.f32 %v755, %v455
    %v781 = vmul.f32 %v756, %v456
    %v782 = vmul.f32 %v757, %v457
    %v783 = vmul.f32 %v758, %v458
    %v784 = vmul.f32 %v759, %v459
    %v785 = vmul.f32 %v435, 0.5
    %v786 = vmul.f32 %v436, 0.5
    %v787 = vmul.f32 %v437, 0.5
    %v788 = vmul.f32 %v438, 0.5
    %v789 = vmul.f32 %v439, 0.5
    %v790 = vmul.f32 %v440, 0.5
    %v791 = vmul.f32 %v441, 0.5
    %v792 = vmul.f32 %v442, 0.5
    %v793 = vmul.f32 %v443, 0.5
    %v794 = vmul.f32 %v444, 0.5
    %v795 = vmul.f32 %v445, 0.5
    %v796 = vmul.f32 %v446, 0.5
    %v797 = vmul.f32 %v447, 0.5
    %v798 = vmul.f32 %v448, 0.5
    %v799 = vmul.f32 %v449, 0.5
    %v800 = vmul.f32 %v450, 0.5
    %v801 = vmul.f32 %v451, 0.5
    %v802 = vmul.f32 %v452, 0.5
    %v803 = vmul.f32 %v453, 0.5
    %v804 = vmul.f32 %v454, 0.5
    %v805 = vmul.f32 %v455, 0.5
    %v806 = vmul.f32 %v456, 0.5
    %v807 = vmul.f32 %v457, 0.5
    %v808 = vmul.f32 %v458, 0.5
    %v809 = vmul.f32 %v459, 0.5
    %v810 = vsub.f32 %v760, %v785
    %v811 = vsub.f32 %v761, %v786
    %v812 = vsub.f32 %v762, %v787
    %v813 = vsub.f32 %v763, %v788
    %v814 = vsub.f32 %v764, %v789
    %v815 = vsub.f32 %v765, %v790
    %v816 = vsub.f32 %v766, %v791
    %v817 = vsub.f32 %v767, %v792
    %v818 = vsub.f32 %v768, %v793
    %v819 = vsub.f32 %v769, %v794
    %v820 = vsub.f32 %v770, %v795
    %v821 = vsub.f32 %v771, %v796
    %v822 = vsub.f32 %v772, %v797
    %v823 = vsub.f32 %v773, %v798
    %v824 = vsub.f32 %v774, %v799
    %v825 = vsub.f32 %v775, %v800
    %v826 = vsub.f32 %v776, %v801
    %v827 = vsub.f32 %v777, %v802
    %v828 = vsub.f32 %v778, %v803
    %v829 = vsub.f32 %v779, %v804
    %v830 = vsub.f32 %v780, %v805
    %v831 = vsub.f32 %v781, %v806
    %v832 = vsub.f32 %v782, %v807
    %v833 = vsub.f32 %v783, %v808
    %v834 = vsub.f32 %v784, %v809
    %v835 = vadd.f32 %v810, 1.0
    %v836 = vadd.f32 %v811, 1.0
    %v837 = vadd.f32 %v812, 1.0
    %v838 = vadd.f32 %v813, 1.0
    %v839 = vadd.f32 %v814, 1.0
    %v840 = vadd.f32 %v815, 1.0
    %v841 = vadd.f32 %v816, 1.0
    %v842 = vadd.f32 %v817, 1.0
    %v843 = vadd.f32 %v818, 1.0
    %v844 = vadd.f32 %v819, 1.0
    %v845 = vadd.f32 %v820, 1.0
    %v846 = vadd.f32 %v821, 1.0
    %v847 = vadd.f32 %v822, 1.0
    %v848 = vadd.f32 %v823, 1.0
    %v849 = vadd.f32 %v824, 1.0
    %v850 = vadd.f32 %v825, 1.0
    %v851 = vadd.f32 %v826, 1.0
    %v852 = vadd.f32 %v827, 1.0
    %v853 = vadd.f32 %v828, 1.0
    %v854 = vadd.f32 %v829, 1.0
    %v855 = vadd.f32 %v830, 1.0
    %v856 = vadd.f32 %v831, 1.0
    %v857 = vadd.f32 %v832, 1.0
    %v858 = vadd.f32 %v833, 1.0
    %v859 = vadd.f32 %v834, 1.0
    %v860 = vcvt.f32.s32.to.zero.pseudo %v260
    %v861 = vcvt.f32.s32.to.zero.pseudo %v261
    %v862 = vcvt.f32.s32.to.zero.pseudo %v262
    %v863 = vcvt.f32.s32.to.zero.pseudo %v263
    %v864 = vcvt.f32.s32.to.zero.pseudo %v264
    %v865 = vcvt.f32.s32.to.zero.pseudo %v265
    %v866 = vcvt.f32.s32.to.zero.pseudo %v266
    %v867 = vcvt.f32.s32.to.zero.pseudo %v267
    %v868 = vcvt.f32.s32.to.zero.pseudo %v268
    %v869 = vcvt.f32.s32.to.zero.pseudo %v269
    %v870 = vcvt.f32.s32.to.zero.pseudo %v270
    %v871 = vcvt.f32.s32.to.zero.pseudo %v271
    %v872 = vcvt.f32.s32.to.zero.pseudo %v272
    %v873 = vcvt.f32.s32.to.zero.pseudo %v273
    %v874 = vcvt.f32.s32.to.zero.pseudo %v274
    %v875 = vcvt.f32.s32.to.zero.pseudo %v275
    %v876 = vcvt.f32.s32.to.zero.pseudo %v276
    %v877 = vcvt.f32.s32.to.zero.pseudo %v277
    %v878 = vcvt.f32.s32.to.zero.pseudo %v278
    %v879 = vcvt.f32.s32.to.zero.pseudo %v279
    %v880 = vcvt.f32.s32.to.zero.pseudo %v280
    %v881 = vcvt.f32.s32.to.zero.pseudo %v281
    %v882 = vcvt.f32.s32.to.zero.pseudo %v282
    %v883 = vcvt.f32.s32.to.zero.pseudo %v283
    %v884 = vcvt.f32.s32.to.zero.pseudo %v284
    %v885 = vand.u32 %v860, 3
    %v886 = vand.u32 %v861, 3
    %v887 = vand.u32 %v862, 3
    %v888 = vand.u32 %v863, 3
    %v889 = vand.u32 %v864, 3
    %v890 = vand.u32 %v865, 3
    %v891 = vand.u32 %v866, 3
    %v892 = vand.u32 %v867, 3
    %v893 = vand.u32 %v868, 3
    %v894 = vand.u32 %v869, 3
    %v895 = vand.u32 %v870, 3
    %v896 = vand.u32 %v871, 3
    %v897 = vand.u32 %v872, 3
    %v898 = vand.u32 %v873, 3
    %v899 = vand.u32 %v874, 3
    %v900 = vand.u32 %v875, 3
    %v901 = vand.u32 %v876, 3
    %v902 = vand.u32 %v877, 3
    %v903 = vand.u32 %v878, 3
    %v904 = vand.u32 %v879, 3
    %v905 = vand.u32 %v880, 3
    %v906 = vand.u32 %v881, 3
    %v907 = vand.u32 %v882, 3
    %v908 = vand.u32 %v883, 3
    %v909 = vand.u32 %v884, 3
    %v910 = vand.u32 %v885, 1
    %v911 = vand.u32 %v886, 1
    %v912 = vand.u32 %v887, 1
    %v913 = vand.u32 %v888, 1
    %v914 = vand.u32 %v889, 1
    %v915 = vand.u32 %v890, 1
    %v916 = vand.u32 %v891, 1
    %v917 = vand.u32 %v892, 1
    %v918 = vand.u32 %v893, 1
    %v919 = vand.u32 %v894, 1
    %v920 = vand.u32 %v895, 1
    %v921 = vand.u32 %v896, 1
    %v922 = vand.u32 %v897, 1
    %v923 = vand.u32 %v898, 1
    %v924 = vand.u32 %v899, 1
    %v925 = vand.u32 %v900, 1
    %v926 = vand.u32 %v901, 1
    %v927 = vand.u32 %v902, 1
    %v928 = vand.u32 %v903, 1
    %v929 = vand.u32 %v904, 1
    %v930 = vand.u32 %v905, 1
    %v931 = vand.u32 %v906, 1
    %v932 = vand.u32 %v907, 1
    %v933 = vand.u32 %v908, 1
    %v934 = vand.u32 %v909, 1
    %vm935 = vcmp.eq.s32.totalorder %v910, 1
    %vm936 = vcmp.eq.s32.totalorder %v911, 1
    %vm937 = vcmp.eq.s32.totalorder %v912, 1
    %vm938 = vcmp.eq.s32.totalorder %v913, 1
    %vm939 = vcmp.eq.s32.totalorder %v914, 1
    %vm940 = vcmp.eq.s32.totalorder %v915, 1
    %vm941 = vcmp.eq.s32.totalorder %v916, 1
    %vm942 = vcmp.eq.s32.totalorder %v917, 1
    %vm943 = vcmp.eq.s32.totalorder %v918, 1
    %vm944 = vcmp.eq.s32.totalorder %v919, 1
    %vm945 = vcmp.eq.s32.totalorder %v920, 1
    %vm946 = vcmp.eq.s32.totalorder %v921, 1
    %vm947 = vcmp.eq.s32.totalorder %v922, 1
    %vm948 = vcmp.eq.s32.totalorder %v923, 1
    %vm949 = vcmp.eq.s32.totalorder %v924, 1
    %vm950 = vcmp.eq.s32.totalorder %v925, 1
    %vm951 = vcmp.eq.s32.totalorder %v926, 1
    %vm952 = vcmp.eq.s32.totalorder %v927, 1
    %vm953 = vcmp.eq.s32.totalorder %v928, 1
    %vm954 = vcmp.eq.s32.totalorder %v929, 1
    %vm955 = vcmp.eq.s32.totalorder %v930, 1
    %vm956 = vcmp.eq.s32.totalorder %v931, 1
    %vm957 = vcmp.eq.s32.totalorder %v932, 1
    %vm958 = vcmp.eq.s32.totalorder %v933, 1
    %vm959 = vcmp.eq.s32.totalorder %v934, 1
    %v960 = vsel %vm935, %v835, %v610
    %v961 = vsel %vm936, %v836, %v611
    %v962 = vsel %vm937, %v837, %v612
    %v963 = vsel %vm938, %v838, %v613
    %v964 = vsel %vm939, %v839, %v614
    %v965 = vsel %vm940, %v840, %v615
    %v966 = vsel %vm941, %v841, %v616
    %v967 = vsel %vm942, %v842, %v617
    %v968 = vsel %vm943, %v843, %v618
    %v969 = vsel %vm944, %v844, %v619
    %v970 = vsel %vm945, %v845, %v620
    %v971 = vsel %vm946, %v846, %v621
    %v972 = vsel %vm947, %v847, %v622
    %v973 = vsel %vm948, %v848, %v623
    %v974 = vsel %vm949, %v849, %v624
    %v975 = vsel %vm950, %v850, %v625
    %v976 = vsel %vm951, %v851, %v626
    %v977 = vsel %vm952, %v852, %v627
    %v978 = vsel %vm953, %v853, %v628
    %v979 = vsel %vm954, %v854, %v629
    %v980 = vsel %vm955, %v855, %v630
    %v981 = vsel %vm956, %v856, %v631
    %v982 = vsel %vm957, %v857, %v632
    %v983 = vsel %vm958, %v858, %v633
    %v984 = vsel %vm959, %v859, %v634
    %v985 = vsel %vm935, %v610, %v835
    %v986 = vsel %vm936, %v611, %v836
    %v987 = vsel %vm937, %v612, %v837
    %v988 = vsel %vm938, %v613, %v838
    %v989 = vsel %vm939, %v614, %v839
    %v990 = vsel %vm940, %v615, %v840
    %v991 = vsel %vm941, %v616, %v841
    %v992 = vsel %vm942, %v617, %v842
    %v993 = vsel %vm943, %v618, %v843
    %v994 = vsel %vm944, %v619, %v844
    %v995 = vsel %vm945, %v620, %v845
    %v996 = vsel %vm946, %v621, %v846
    %v997 = vsel %vm947, %v622, %v847
    %v998 = vsel %vm948, %v623, %v848
    %v999 = vsel %vm949, %v624, %v849
    %v1000 = vsel %vm950, %v625, %v850
    %v1001 = vsel %vm951, %v626, %v851
    %v1002 = vsel %vm952, %v627, %v852
    %v1003 = vsel %vm953, %v628, %v853
    %v1004 = vsel %vm954, %v629, %v854
    %v1005 = vsel %vm955, %v630, %v855
    %v1006 = vsel %vm956, %v631, %v856
    %v1007 = vsel %vm957, %v632, %v857
    %v1008 = vsel %vm958, %v633, %v858
    %v1009 = vsel %vm959, %v634, %v859
    %vm1010 = vcmp.ge.s32.totalorder %v885, 2
    %vm1011 = vcmp.ge.s32.totalorder %v886, 2
    %vm1012 = vcmp.ge.s32.totalorder %v887, 2
    %vm1013 = vcmp.ge.s32.totalorder %v888, 2
    %vm1014 = vcmp.ge.s32.totalorder %v889, 2
    %vm1015 = vcmp.ge.s32.totalorder %v890, 2
    %vm1016 = vcmp.ge.s32.totalorder %v891, 2
    %vm1017 = vcmp.ge.s32.totalorder %v892, 2
    %vm1018 = vcmp.ge.s32.totalorder %v893, 2
    %vm1019 = vcmp.ge.s32.totalorder %v894, 2
    %vm1020 = vcmp.ge.s32.totalorder %v895, 2
    %vm1021 = vcmp.ge.s32.totalorder %v896, 2
    %vm1022 = vcmp.ge.s32.totalorder %v897, 2
    %vm1023 = vcmp.ge.s32.totalorder %v898, 2
    %vm1024 = vcmp.ge.s32.totalorder %v899, 2
    %vm1025 = vcmp.ge.s32.totalorder %v900, 2
    %vm1026 = vcmp.ge.s32.totalorder %v901, 2
    %vm1027 = vcmp.ge.s32.totalorder %v902, 2
    %vm1028 = vcmp.ge.s32.totalorder %v903, 2
    %vm1029 = vcmp.ge.s32.totalorder %v904, 2
    %vm1030 = vcmp.ge.s32.totalorder %v905, 2
    %vm1031 = vcmp.ge.s32.totalorder %v906, 2
    %vm1032 = vcmp.ge.s32.totalorder %v907, 2
    %vm1033 = vcmp.ge.s32.totalorder %v908, 2
    %vm1034 = vcmp.ge.s32.totalorder %v909, 2
    %v1035 = vsub.f32 0.0, %v960
    %v1036 = vsub.f32 0.0, %v961
    %v1037 = vsub.f32 0.0, %v962
    %v1038 = vsub.f32 0.0, %v963
    %v1039 = vsub.f32 0.0, %v964
    %v1040 = vsub.f32 0.0, %v965
    %v1041 = vsub.f32 0.0, %v966
    %v1042 = vsub.f32 0.0, %v967
    %v1043 = vsub.f32 0.0, %v968
    %v1044 = vsub.f32 0.0, %v969
    %v1045 = vsub.f32 0.0, %v970
    %v1046 = vsub.f32 0.0, %v971
    %v1047 = vsub.f32 0.0, %v972
    %v1048 = vsub.f32 0.0, %v973
    %v1049 = vsub.f32 0.0, %v974
    %v1050 = vsub.f32 0.0, %v975
    %v1051 = vsub.f32 0.0, %v976
    %v1052 = vsub.f32 0.0, %v977
    %v1053 = vsub.f32 0.0, %v978
    %v1054 = vsub.f32 0.0, %v979
    %v1055 = vsub.f32 0.0, %v980
    %v1056 = vsub.f32 0.0, %v981
    %v1057 = vsub.f32 0.0, %v982
    %v1058 = vsub.f32 0.0, %v983
    %v1059 = vsub.f32 0.0, %v984
    %v1060 = vsel %vm1010, %v1035, %v960
    %v1061 = vsel %vm1011, %v1036, %v961
    %v1062 = vsel %vm1012, %v1037, %v962
    %v1063 = vsel %vm1013, %v1038, %v963
    %v1064 = vsel %vm1014, %v1039, %v964
    %v1065 = vsel %vm1015, %v1040, %v965
    %v1066 = vsel %vm1016, %v1041, %v966
    %v1067 = vsel %vm1017, %v1042, %v967
    %v1068 = vsel %vm1018, %v1043, %v968
    %v1069 = vsel %vm1019, %v1044, %v969
    %v1070 = vsel %vm1020, %v1045, %v970
    %v1071 = vsel %vm1021, %v1046, %v971
    %v1072 = vsel %vm1022, %v1047, %v972
    %v1073 = vsel %vm1023, %v1048, %v973
    %v1074 = vsel %vm1024, %v1049, %v974
    %v1075 = vsel %vm1025, %v1050, %v975
    %v1076 = vsel %vm1026, %v1051, %v976
    %v1077 = vsel %vm1027, %v1052, %v977
    %v1078 = vsel %vm1028, %v1053, %v978
    %v1079 = vsel %vm1029, %v1054, %v979
    %v1080 = vsel %vm1030, %v1055, %v980
    %v1081 = vsel %vm1031, %v1056, %v981
    %v1082 = vsel %vm1032, %v1057, %v982
    %v1083 = vsel %vm1033, %v1058, %v983
    %v1084 = vsel %vm1034, %v1059, %v984
    %v1085 = vadd.s32 %v885, 1
    %v1086 = vadd.s32 %v886, 1
    %v1087 = vadd.s32 %v887, 1
    %v1088 = vadd.s32 %v888, 1
    %v1089 = vadd.s32 %v889, 1
    %v1090 = vadd.s32 %v890, 1
    %v1091 = vadd.s32 %v891, 1
    %v1092 = vadd.s32 %v892, 1
    %v1093 = vadd.s32 %v893, 1
    %v1094 = vadd.s32 %v894, 1
    %v1095 = vadd.s32 %v895, 1
    %v1096 = vadd.s32 %v896, 1
    %v1097 = vadd.s32 %v897, 1
    %v1098 = vadd.s32 %v898, 1
    %v1099 = vadd.s32 %v899, 1
    %v1100 = vadd.s32 %v900, 1
    %v1101 = vadd.s32 %v901, 1
    %v1102 = vadd.s32 %v902, 1
    %v1103 = vadd.s32 %v903, 1
    %v1104 = vadd.s32 %v904, 1
    %v1105 = vadd.s32 %v905, 1
    %v1106 = vadd.s32 %v906, 1
    %v1107 = vadd.s32 %v907, 1
    %v1108 = vadd.s32 %v908, 1
    %v1109 = vadd.s32 %v909, 1
    %v1110 = vand.u32 %v1085, 2
    %v1111 = vand.u32 %v1086, 2
    %v1112 = vand.u32 %v1087, 2
    %v1113 = vand.u32 %v1088, 2
    %v1114 = vand.u32 %v1089, 2
    %v1115 = vand.u32 %v1090, 2
    %v1116 = vand.u32 %v1091, 2
    %v1117 = vand.u32 %v1092, 2
    %v1118 = vand.u32 %v1093, 2
    %v1119 = vand.u32 %v1094, 2
    %v1120 = vand.u32 %v1095, 2
    %v1121 = vand.u32 %v1096, 2
    %v1122 = vand.u32 %v1097, 2
    %v1123 = vand.u32 %v1098, 2
    %v1124 = vand.u32 %v1099, 2
    %v1125 = vand.u32 %v1100, 2
    %v1126 = vand.u32 %v1101, 2
    %v1127 = vand.u32 %v1102, 2
    %v1128 = vand.u32 %v1103, 2
    %v1129 = vand.u32 %v1104, 2
    %v1130 = vand.u32 %v1105, 2
    %v1131 = vand.u32 %v1106, 2
    %v1132 = vand.u32 %v1107, 2
    %v1133 = vand.u32 %v1108, 2
    %v1134 = vand.u32 %v1109, 2
    %vm1135 = vcmp.eq.s32.totalorder %v1110, 2
    %vm1136 = vcmp.eq.s32.totalorder %v1111, 2
    %vm1137 = vcmp.eq.s32.totalorder %v1112, 2
    %vm1138 = vcmp.eq.s32.totalorder %v1113, 2
    %vm1139 = vcmp.eq.s32.totalorder %v1114, 2
    %vm1140 = vcmp.eq.s32.totalorder %v1115, 2
    %vm1141 = vcmp.eq.s32.totalorder %v1116, 2
    %vm1142 = vcmp.eq.s32.totalorder %v1117, 2
    %vm1143 = vcmp.eq.s32.totalorder %v1118, 2
    %vm1144 = vcmp.eq.s32.totalorder %v1119, 2
    %vm1145 = vcmp.eq.s32.totalorder %v1120, 2
    %vm1146 = vcmp.eq.s32.totalorder %v1121, 2
    %vm1147 = vcmp.eq.s32.totalorder %v1122, 2
    %vm1148 = vcmp.eq.s32.totalorder %v1123, 2
    %vm1149 = vcmp.eq.s32.totalorder %v1124, 2
    %vm1150 = vcmp.eq.s32.totalorder %v1125, 2
    %vm1151 = vcmp.eq.s32.totalorder %v1126, 2
    %vm1152 = vcmp.eq.s32.totalorder %v1127, 2
    %vm1153 = vcmp.eq.s32.totalorder %v1128, 2
    %vm1154 = vcmp.eq.s32.totalorder %v1129, 2
    %vm1155 = vcmp.eq.s32.totalorder %v1130, 2
    %vm1156 = vcmp.eq.s32.totalorder %v1131, 2
    %vm1157 = vcmp.eq.s32.totalorder %v1132, 2
    %vm1158 = vcmp.eq.s32.totalorder %v1133, 2
    %vm1159 = vcmp.eq.s32.totalorder %v1134, 2
    %v1160 = vsub.f32 0.0, %v985
    %v1161 = vsub.f32 0.0, %v986
    %v1162 = vsub.f32 0.0, %v987
    %v1163 = vsub.f32 0.0, %v988
    %v1164 = vsub.f32 0.0, %v989
    %v1165 = vsub.f32 0.0, %v990
    %v1166 = vsub.f32 0.0, %v991
    %v1167 = vsub.f32 0.0, %v992
    %v1168 = vsub.f32 0.0, %v993
    %v1169 = vsub.f32 0.0, %v994
    %v1170 = vsub.f32 0.0, %v995
    %v1171 = vsub.f32 0.0, %v996
    %v1172 = vsub.f32 0.0, %v997
    %v1173 = vsub.f32 0.0, %v998
    %v1174 = vsub.f32 0.0, %v999
    %v1175 = vsub.f32 0.0, %v1000
    %v1176 = vsub.f32 0.0, %v1001
    %v1177 = vsub.f32 0.0, %v1002
    %v1178 = vsub.f32 0.0, %v1003
    %v1179 = vsub.f32 0.0, %v1004
    %v1180 = vsub.f32 0.0, %v1005
    %v1181 = vsub.f32 0.0, %v1006
    %v1182 = vsub.f32 0.0, %v1007
    %v1183 = vsub.f32 0.0, %v1008
    %v1184 = vsub.f32 0.0, %v1009
    %v1185 = vsel %vm1135, %v1160, %v985
    %v1186 = vsel %vm1136, %v1161, %v986
    %v1187 = vsel %vm1137, %v1162, %v987
    %v1188 = vsel %vm1138, %v1163, %v988
    %v1189 = vsel %vm1139, %v1164, %v989
    %v1190 = vsel %vm1140, %v1165, %v990
    %v1191 = vsel %vm1141, %v1166, %v991
    %v1192 = vsel %vm1142, %v1167, %v992
    %v1193 = vsel %vm1143, %v1168, %v993
    %v1194 = vsel %vm1144, %v1169, %v994
    %v1195 = vsel %vm1145, %v1170, %v995
    %v1196 = vsel %vm1146, %v1171, %v996
    %v1197 = vsel %vm1147, %v1172, %v997
    %v1198 = vsel %vm1148, %v1173, %v998
    %v1199 = vsel %vm1149, %v1174, %v999
    %v1200 = vsel %vm1150, %v1175, %v1000
    %v1201 = vsel %vm1151, %v1176, %v1001
    %v1202 = vsel %vm1152, %v1177, %v1002
    %v1203 = vsel %vm1153, %v1178, %v1003
    %v1204 = vsel %vm1154, %v1179, %v1004
    %v1205 = vsel %vm1155, %v1180, %v1005
    %v1206 = vsel %vm1156, %v1181, %v1006
    %v1207 = vsel %vm1157, %v1182, %v1007
    %v1208 = vsel %vm1158, %v1183, %v1008
    %v1209 = vsel %vm1159, %v1184, %v1009
    %1235 = vrot.lane.b32.xlu0 %v1185, 64
    %v1236 = vpop.permute.xlu0 %1235
    %1237 = vrot.lane.b32.xlu0 %v1186, 64
    %v1238 = vpop.permute.xlu0 %1237
    %1239 = vrot.lane.b32.xlu0 %v1187, 64
    %v1240 = vpop.permute.xlu0 %1239
    %1241 = vrot.lane.b32.xlu0 %v1188, 64
    %v1242 = vpop.permute.xlu0 %1241
    %1243 = vrot.lane.b32.xlu0 %v1189, 64
    %v1244 = vpop.permute.xlu0 %1243
    %1245 = vrot.lane.b32.xlu0 %v1190, 64
    %v1246 = vpop.permute.xlu0 %1245
    %1247 = vrot.lane.b32.xlu0 %v1191, 64
    %v1248 = vpop.permute.xlu0 %1247
    %1249 = vrot.lane.b32.xlu0 %v1192, 64
    %v1250 = vpop.permute.xlu0 %1249
    %1251 = vrot.lane.b32.xlu0 %v1193, 64
    %v1252 = vpop.permute.xlu0 %1251
    %1253 = vrot.lane.b32.xlu0 %v1194, 64
    %v1254 = vpop.permute.xlu0 %1253
    %1255 = vrot.lane.b32.xlu0 %v1195, 64
    %v1256 = vpop.permute.xlu0 %1255
    %1257 = vrot.lane.b32.xlu0 %v1196, 64
    %v1258 = vpop.permute.xlu0 %1257
    %1259 = vrot.lane.b32.xlu0 %v1197, 64
    %v1260 = vpop.permute.xlu0 %1259
    %1261 = vrot.lane.b32.xlu0 %v1198, 64
    %v1262 = vpop.permute.xlu0 %1261
    %1263 = vrot.lane.b32.xlu0 %v1199, 64
    %v1264 = vpop.permute.xlu0 %1263
    %1265 = vrot.lane.b32.xlu0 %v1200, 64
    %v1266 = vpop.permute.xlu0 %1265
    %1267 = vrot.lane.b32.xlu0 %v1201, 64
    %v1268 = vpop.permute.xlu0 %1267
    %1269 = vrot.lane.b32.xlu0 %v1202, 64
    %v1270 = vpop.permute.xlu0 %1269
    %1271 = vrot.lane.b32.xlu0 %v1203, 64
    %v1272 = vpop.permute.xlu0 %1271
    %1273 = vrot.lane.b32.xlu0 %v1204, 64
    %v1274 = vpop.permute.xlu0 %1273
    %1275 = vrot.lane.b32.xlu0 %v1205, 64
    %v1276 = vpop.permute.xlu0 %1275
    %1277 = vrot.lane.b32.xlu0 %v1206, 64
    %v1278 = vpop.permute.xlu0 %1277
    %1279 = vrot.lane.b32.xlu0 %v1207, 64
    %v1280 = vpop.permute.xlu0 %1279
    %1281 = vrot.lane.b32.xlu0 %v1208, 64
    %v1282 = vpop.permute.xlu0 %1281
    %1283 = vrot.lane.b32.xlu0 %v1209, 64
    %v1284 = vpop.permute.xlu0 %1283
    %vm1310 = vcmask 523264
    %v1311 = vsel %vm1310, %v1060, %v1236
    %v1312 = vsel %vm1310, %v1061, %v1238
    %v1313 = vsel %vm1310, %v1062, %v1240
    %v1314 = vsel %vm1310, %v1063, %v1242
    %v1315 = vsel %vm1310, %v1064, %v1244
    %v1316 = vsel %vm1310, %v1065, %v1246
    %v1317 = vsel %vm1310, %v1066, %v1248
    %v1318 = vsel %vm1310, %v1067, %v1250
    %v1319 = vsel %vm1310, %v1068, %v1252
    %v1320 = vsel %vm1310, %v1069, %v1254
    %v1321 = vsel %vm1310, %v1070, %v1256
    %v1322 = vsel %vm1310, %v1071, %v1258
    %v1323 = vsel %vm1310, %v1072, %v1260
    %v1324 = vsel %vm1310, %v1073, %v1262
    %v1325 = vsel %vm1310, %v1074, %v1264
    %v1326 = vsel %vm1310, %v1075, %v1266
    %v1327 = vsel %vm1310, %v1076, %v1268
    %v1328 = vsel %vm1310, %v1077, %v1270
    %v1329 = vsel %vm1310, %v1078, %v1272
    %v1330 = vsel %vm1310, %v1079, %v1274
    %v1331 = vsel %vm1310, %v1080, %v1276
    %v1332 = vsel %vm1310, %v1081, %v1278
    %v1333 = vsel %vm1310, %v1082, %v1280
    %v1334 = vsel %vm1310, %v1083, %v1282
    %v1335 = vsel %vm1310, %v1084, %v1284
    %1336 = vst [vmem:[#allocation2] sm:$0xff] %v1311
    %1337 = vst [vmem:[#allocation2 + $0x8] sm:$0xff] %v1312
    %1338 = vst [vmem:[#allocation2 + $0x10] sm:$0xff] %v1313
    %1339 = vst [vmem:[#allocation2 + $0x18] sm:$0xff] %v1314
    %1340 = vst [vmem:[#allocation2 + $0x20] sm:$0xff] %v1315
    %1341 = vst [vmem:[#allocation2 + $0x28] sm:$0xff] %v1316
    %1342 = vst [vmem:[#allocation2 + $0x30] sm:$0xff] %v1317
    %1343 = vst [vmem:[#allocation2 + $0x38] sm:$0xff] %v1318
    %1344 = vst [vmem:[#allocation2 + $0x40] sm:$0xff] %v1319
    %1345 = vst [vmem:[#allocation2 + $0x48] sm:$0xff] %v1320
    %1346 = vst [vmem:[#allocation2 + $0x50] sm:$0xff] %v1321
    %1347 = vst [vmem:[#allocation2 + $0x58] sm:$0xff] %v1322
    %1348 = vst [vmem:[#allocation2 + $0x60] sm:$0xff] %v1323
    %1349 = vst [vmem:[#allocation2 + $0x68] sm:$0xff] %v1324
    %1350 = vst [vmem:[#allocation2 + $0x70] sm:$0xff] %v1325
    %1351 = vst [vmem:[#allocation2 + $0x78] sm:$0xff] %v1326
    %1352 = vst [vmem:[#allocation2 + $0x80] sm:$0xff] %v1327
    %1353 = vst [vmem:[#allocation2 + $0x88] sm:$0xff] %v1328
    %1354 = vst [vmem:[#allocation2 + $0x90] sm:$0xff] %v1329
    %1355 = vst [vmem:[#allocation2 + $0x98] sm:$0xff] %v1330
    %1356 = vst [vmem:[#allocation2 + $0xa0] sm:$0xff] %v1331
    %1357 = vst [vmem:[#allocation2 + $0xa8] sm:$0xff] %v1332
    %1358 = vst [vmem:[#allocation2 + $0xb0] sm:$0xff] %v1333
    %1359 = vst [vmem:[#allocation2 + $0xb8] sm:$0xff] %v1334
    %1360 = vst [vmem:[#allocation2 + $0xc0] sm:$0xff] %v1335
    // Predicated region
    $region10: #{tpu_custom_call.1} parent=1 // pred_check
      _
    $region11: #{tpu_custom_call.1} parent=1 // pred_check_branch
      %1362 = sbr.rel (0) target = $region13
    $region12: #{tpu_custom_call.1} parent=1 // pred_region
      %1364 = vsyncadd [#allocation3], 0
      %s1365 = sshll.u32 [#allocation2], 4
      %s1366 = int_to_ptr.vmem [resolvable:$true] %s1365
      %s1367 = sshll.u32 %s2, 4
      %s1368 = int_to_ptr.hbm [resolvable:$true] %s1367
      %1373 = dma.vmem_to_hbm [thread:$0]  %s1366, 3200, %s1368, [#allocation3], 128, 128, 8
    $region13: #{tpu_custom_call.1} parent=1 // pred_fallthru
      _
    // Predicated region
    $region14: #{tpu_custom_call.1} parent=1 // pred_check
      _
    $region15: #{tpu_custom_call.1} parent=1 // pred_check_branch
      %1375 = sbr.rel (0) target = $region17
    $region16: #{tpu_custom_call.1} parent=1 // pred_region
      %1377 = dma.done [#allocation3], 3200
    $region17: #{tpu_custom_call.1} parent=1 // pred_fallthru
      _
    %1378 = vsyncpa [#allocation3], 1

</llo_original>
